<compile_context>
chip_gen: v7x
topology: tpu7x:2x2x1
jax: 0.10.0
libtpu: 0.0.40
codegen_flags: <defaults>
</compile_context>

<pallas_src>
import functools

import jax
import jax.numpy as jnp
from jax import lax
from jax.experimental import pallas as pl
from jax.experimental.pallas import tpu as pltpu


def _round_up(v, m):
    return (v + m - 1) // m * m


# ------------------------- fused head + decode kernel ------------------------

def _head_decode_kernel(x_ref, w_ref, b_ref, cxcy_ref, wh_ref, o_ref, *, pa):
    # x:    (Cin, T)   bf16  features, lanes = positions of one image tile
    # w:    (AKp, Cin) bf16  banded head weight rows [xy(2A) | wh(2A) | cls]
    # b:    (AKp, 1)   f32   banded head bias
    # cxcy: (pa, T)    f32   rows [cx_0, cy_0, cx_1, cy_1, ...] (pad rows = 0)
    # wh:   (pa, T)    f32   rows [w_0,  h_0,  w_1,  h_1,  ...] (pad rows = 0)
    # o:    (AKp, T)   f32   decoded detections in banded row layout
    acc = jnp.dot(w_ref[...], x_ref[...], preferred_element_type=jnp.float32)
    acc = acc + b_ref[...]                                  # lane-broadcast bias
    wh = wh_ref[...]

    # xy band: cx + dx*w ; cy + dy*h
    o_ref[0:pa, :] = cxcy_ref[...] + acc[0:pa, :] * wh
    # wh band: w*exp(dw) ; h*exp(dh)
    # TODO(synk): torchvision clamps dw/dh before exp; the reference PyTorch
    # inferencing() path does not, so neither do we (semantics preserved).
    o_ref[pa:2 * pa, :] = wh * jnp.exp(acc[pa:2 * pa, :])
    # class / objectness band: sigmoid
    o_ref[2 * pa:, :] = jax.nn.sigmoid(acc[2 * pa:, :])


# --------------------- one-time weight / anchor preparation ------------------

def prepare_head(head_w, head_b, A, K):
    """Permute native head rows (row = a*K + k) into contiguous bands
    [xy (2A) | wh (2A) | cls (A*(K-4))], each zero-padded to 8 sublanes."""
    AK, _ = head_w.shape
    assert AK == A * K
    idx_xy = jnp.asarray([a * K + k for a in range(A) for k in (0, 1)], jnp.int32)
    idx_wh = jnp.asarray([a * K + k for a in range(A) for k in (2, 3)], jnp.int32)
    idx_cl = jnp.asarray([a * K + k for a in range(A) for k in range(4, K)], jnp.int32)
    pa = _round_up(2 * A, 8)
    pc = _round_up(A * (K - 4), 8)

    def band(arr, idx, rows):
        sel = arr[idx]
        pad = ((0, rows - sel.shape[0]),) + ((0, 0),) * (arr.ndim - 1)
        return jnp.pad(sel, pad)

    w_banded = jnp.concatenate([band(head_w, idx_xy, pa),
                                band(head_w, idx_wh, pa),
                                band(head_w, idx_cl, pc)], axis=0)
    b_banded = jnp.concatenate([band(head_b, idx_xy, pa),
                                band(head_b, idx_wh, pa),
                                band(head_b, idx_cl, pc)], axis=0)
    return w_banded.astype(jnp.bfloat16), b_banded.astype(jnp.float32), pa, pc


def build_anchor_bands(anchors, A, pa, s_pad):
    """anchors (N,4)=[cx,cy,w,h], N = S*A (anchor index fastest) -> compact
    per-anchor row planes (pa, s_pad) f32: no per-batch tiling, no K-fold
    zero/one filler, anchors stay f32 (no bf16 downcast of coordinates)."""
    N = anchors.shape[0]
    S = N // A
    anc = anchors.reshape(S, A, 4).astype(jnp.float32)
    cxcy = jnp.transpose(anc[:, :, 0:2], (1, 2, 0)).reshape(2 * A, S)
    wh = jnp.transpose(anc[:, :, 2:4], (1, 2, 0)).reshape(2 * A, S)
    pad = ((0, pa - 2 * A), (0, s_pad - S))
    return jnp.pad(cxcy, pad), jnp.pad(wh, pad)


# ------------------------------ pallas wrapper --------------------------------

def head_decode(feats, w_banded, b_banded, anc_cxcy, anc_wh, pa, *,
                lane_tile=4096):
    """Fused shared-head 1x1 conv + anchor decode + sigmoid.

    feats: (B, Cin, S) bf16 -> banded kernel output (B, AKp, Spad) f32."""
    B, Cin, S = feats.shape
    AKp = w_banded.shape[0]
    s_pad = anc_cxcy.shape[1]

    # Lane tile: multiple of 128 dividing the padded position axis.  Keep at
    # least 2 total grid steps so v7x's two TensorCores both get work.
    tile = max(128, (min(lane_tile, s_pad) // 128) * 128)
    if B == 1 and s_pad > 128:
        tile = min(tile, max(128, (s_pad // 2 // 128) * 128))
    while s_pad % tile:
        tile -= 128
    grid = (s_pad // tile, B)    # positions OUTER, batch INNER -> anchor blocks
                                 # stay resident across the whole batch.

    if S != s_pad:
        feats = jnp.pad(feats, ((0, 0), (0, 0), (0, s_pad - S)))

    # VMEM budget: double-buffered streaming blocks + resident weight/bias,
    # with headroom (explicit so larger tiles still compile on every gen).
    blk_bytes = Cin * tile * 2 + 2 * pa * tile * 4 + AKp * tile * 4
    fixed_bytes = AKp * Cin * 2 + AKp * 4
    vmem_limit = int(min(max(2 * (2 * blk_bytes + fixed_bytes), 8 << 20), 48 << 20))

    A2 = 2 * pa  # upper bound on xy+wh rows (padded)
    cost = pl.CostEstimate(
        flops=2 * AKp * Cin * B * s_pad,
        transcendentals=(A2 // 2 + (AKp - A2)) * B * s_pad,
        bytes_accessed=(feats.size * 2 + w_banded.size * 2 + b_banded.size * 4
                        + (anc_cxcy.size + anc_wh.size) * 4
                        + B * AKp * s_pad * 4),
    )

    kernel = functools.partial(_head_decode_kernel, pa=pa)
    out = pl.pallas_call(
        kernel,
        out_shape=jax.ShapeDtypeStruct((B, AKp, s_pad), jnp.float32),
        grid=grid,
        in_specs=[
            # features read straight from (B, Cin, Spad): no wrapper transpose
            pl.BlockSpec((pl.Squeezed(), Cin, tile), lambda j, b: (b, 0, j)),
            pl.BlockSpec((AKp, Cin), lambda j, b: (0, 0)),     # resident weight
            pl.BlockSpec((AKp, 1), lambda j, b: (0, 0)),       # resident bias
            pl.BlockSpec((pa, tile), lambda j, b: (0, j)),     # anchors: batch-invariant
            pl.BlockSpec((pa, tile), lambda j, b: (0, j)),
        ],
        out_specs=pl.BlockSpec((pl.Squeezed(), AKp, tile), lambda j, b: (b, 0, j)),
        compiler_params=pltpu.CompilerParams(
            dimension_semantics=("parallel", "parallel"),
            vmem_limit_bytes=vmem_limit),
        cost_estimate=cost,
    )(feats, w_banded, b_banded, anc_cxcy, anc_wh)
    return out


def decode_output(out, A, K, pa, S):
    """(B, AKp, Spad) banded kernel output -> (B, N, K) decoded detections.
    Single layout pass: fuses the PyTorch cat(reg, cls) + permute(0, 2, 1)."""
    B = out.shape[0]
    xy = out[:, 0:2 * A, :S].reshape(B, A, 2, S)
    wh = out[:, pa:pa + 2 * A, :S].reshape(B, A, 2, S)
    cl = out[:, 2 * pa:2 * pa + A * (K - 4), :S].reshape(B, A, K - 4, S)
    dt = jnp.concatenate([xy, wh, cl], axis=2)             # (B, A, K, S)
    return jnp.transpose(dt, (0, 3, 1, 2)).reshape(B, S * A, K)


# --------------------------- synthetic sub-modules ---------------------------

def conv2d(x, w, b, stride=1):
    # plain-JAX glue: backbone/neck are injected modules in the PyTorch code.
    y = lax.conv_general_dilated(
        x, w, window_strides=(stride, stride), padding="SAME",
        dimension_numbers=("NCHW", "OIHW", "NCHW"))
    return y + b[None, :, None, None]


def init_params(key, cin=3, feat=32, A=2, num_classes=3):
    K = 4 + 1 + num_classes
    keys = jax.random.split(key, 11)

    def w(k, shape, scale=0.1):
        return scale * jax.random.normal(k, shape, jnp.float32)

    p = {}
    # backbone: cin->8 (s2), 8->16 (s2, c3), 16->24 (s2, c4), 24->32 (s2, c5)
    p["bb0_w"] = w(keys[0], (8, cin, 3, 3)); p["bb0_b"] = jnp.zeros((8,), jnp.float32)
    p["bb1_w"] = w(keys[1], (16, 8, 3, 3));  p["bb1_b"] = jnp.zeros((16,), jnp.float32)
    p["bb2_w"] = w(keys[2], (24, 16, 3, 3)); p["bb2_b"] = jnp.zeros((24,), jnp.float32)
    p["bb3_w"] = w(keys[3], (32, 24, 3, 3)); p["bb3_b"] = jnp.zeros((32,), jnp.float32)
    # neck: 1x1 laterals to `feat` channels, plus p6/p7 strided convs
    p["lat3_w"] = w(keys[4], (feat, 16, 1, 1)); p["lat3_b"] = jnp.zeros((feat,), jnp.float32)
    p["lat4_w"] = w(keys[5], (feat, 24, 1, 1)); p["lat4_b"] = jnp.zeros((feat,), jnp.float32)
    p["lat5_w"] = w(keys[6], (feat, 32, 1, 1)); p["lat5_b"] = jnp.zeros((feat,), jnp.float32)
    p["p6_w"] = w(keys[7], (feat, feat, 3, 3)); p["p6_b"] = jnp.zeros((feat,), jnp.float32)
    p["p7_w"] = w(keys[8], (feat, feat, 3, 3)); p["p7_b"] = jnp.zeros((feat,), jnp.float32)
    # shared head: 1x1 conv feat -> A*K   (native output channel = a*K + k)
    p["head_w"] = w(keys[9], (A * K, feat))
    p["head_b"] = 0.01 * jax.random.normal(keys[10], (A * K, 1), jnp.float32)
    return p


def retinanet_features(params, x):
    """backbone -> neck (p3..p7), flattened & concatenated to (B, feat, S) bf16
    (bf16 MXU feed is emitted by the neck itself -- no extra cast pass later)."""
    relu = jax.nn.relu
    c1 = relu(conv2d(x, params["bb0_w"], params["bb0_b"], 2))
    c3 = relu(conv2d(c1, params["bb1_w"], params["bb1_b"], 2))
    c4 = relu(conv2d(c3, params["bb2_w"], params["bb2_b"], 2))
    c5 = relu(conv2d(c4, params["bb3_w"], params["bb3_b"], 2))
    p3 = conv2d(c3, params["lat3_w"], params["lat3_b"], 1)
    p4 = conv2d(c4, params["lat4_w"], params["lat4_b"], 1)
    p5 = conv2d(c5, params["lat5_w"], params["lat5_b"], 1)
    p6 = conv2d(p5, params["p6_w"], params["p6_b"], 2)
    p7 = conv2d(relu(p6), params["p7_w"], params["p7_b"], 2)
    B = x.shape[0]
    return jnp.concatenate(
        [f.reshape(B, f.shape[1], -1) for f in (p3, p4, p5, p6, p7)],
        axis=-1).astype(jnp.bfloat16)


def generate_anchors(level_shapes, strides, scales):
    """Synthetic generateAnchors: per-level (h, w, a) order, rows = (cx, cy, w, h)."""
    rows = []
    scales = jnp.asarray(scales, jnp.float32)
    A = scales.shape[0]
    for (H, W), s in zip(level_shapes, strides):
        ys = (jnp.arange(H, dtype=jnp.float32) + 0.5) * s
        xs = (jnp.arange(W, dtype=jnp.float32) + 0.5) * s
        cy, cx = jnp.meshgrid(ys, xs, indexing="ij")                  # (H, W)
        cx = jnp.broadcast_to(cx[:, :, None], (H, W, A))
        cy = jnp.broadcast_to(cy[:, :, None], (H, W, A))
        wh = jnp.broadcast_to(scales[None, None, :] * (4.0 * s), (H, W, A))
        rows.append(jnp.stack([cx, cy, wh, wh], axis=-1).reshape(-1, 4))
    return jnp.concatenate(rows, axis=0)                              # (N, 4)


def retinanet_inferencing(params, head_prep, anchor_prep, x, A, num_classes):
    K = 4 + 1 + num_classes
    w_banded, b_banded, pa, _ = head_prep
    anc_cxcy, anc_wh = anchor_prep
    feats = retinanet_features(params, x)                             # (B, Cin, S) bf16
    S = feats.shape[-1]
    out = head_decode(feats, w_banded, b_banded, anc_cxcy, anc_wh, pa)
    decoded = decode_output(out, A, K, pa, S)                         # (B, N, K)
    # TODO(synk): non_max_suppression + Result wrapping are data-dependent,
    # variable-length per-image ops with no clean Pallas equivalent; return the
    # decoded, sigmoided detections (the tensor fed into NMS) instead.
    return decoded


# ---------------------------------- main -------------------------------------

if __name__ == "__main__":
    num_classes = 3
    scales = (1.0, 1.26)          # anchor_ratios=[1.0], anchor_scales=scales -> A=2
    A = len(scales)
    K = 4 + 1 + num_classes

    key = jax.random.PRNGKey(0)
    kx, kp = jax.random.split(key)
    x = jax.random.normal(kx, (2, 3, 32, 32), jnp.float32)            # NCHW like PyTorch
    params = init_params(kp, cin=3, feat=32, A=A, num_classes=num_classes)

    # pyramid levels for a 32x32 input: p3..p7
    level_shapes = [(8, 8), (4, 4), (2, 2), (1, 1), (1, 1)]
    strides = [4, 8, 16, 32, 32]
    anchors = generate_anchors(level_shapes, strides, scales)          # (N, 4), N = 172
    N = anchors.shape[0]
    S = N // A

    # One-time prep, hoisted out of the per-call path (anchors & head layout
    # are constants per image size).
    head_prep = prepare_head(params["head_w"], params["head_b"], A, K)
    pa = head_prep[2]
    s_pad = _round_up(S, 128)
    anchor_prep = build_anchor_bands(anchors, A, pa, s_pad)

    decoded = retinanet_inferencing(params, head_prep, anchor_prep, x, A, num_classes)
    decoded = jax.block_until_ready(decoded)

    # Pure-JAX reference for the ENTIRE fused kernel (head matmul + bias +
    # anchor decode + sigmoid) in the head's native row layout -- validates
    # both the banded MXU layout and the epilogue / output re-assembly.
    feats_ref = retinanet_features(params, x).astype(jnp.float32)      # same bf16 feed
    w_ref_mat = params["head_w"].astype(jnp.bfloat16).astype(jnp.float32)
    y = jnp.einsum("oc,bcs->bos", w_ref_mat, feats_ref) + params["head_b"][None]
    B = feats_ref.shape[0]
    dt_ref = jnp.transpose(y.reshape(B, A, K, S), (0, 2, 3, 1)).reshape(B, K, S * A)
    anc_t = jnp.transpose(anchors)[None]                               # (1, 4, N)
    ref = jnp.concatenate([
        anc_t[:, 0:2] + dt_ref[:, 0:2] * anc_t[:, 2:4],
        anc_t[:, 2:4] * jnp.exp(dt_ref[:, 2:4]),
        jax.nn.sigmoid(dt_ref[:, 4:]),
    ], axis=1)
    ref = jnp.transpose(ref, (0, 2, 1))                                # (B, N, K)

    assert decoded.shape == (2, N, K)
    assert bool(jnp.allclose(decoded, ref, rtol=1e-2, atol=1e-2)), "head+decode mismatch"

    print("KERNEL_OK")
</pallas_src>

<mosaic_0001>
module attributes {stable_mosaic.version = 11 : i64} {
  func.func @_head_decode_kernel(%arg0: i32, %arg1: i32, %arg2: memref<1x32x128xbf16, #tpu.memory_space<vmem>>, %arg3: memref<24x32xbf16, #tpu.memory_space<vmem>>, %arg4: memref<24x1xf32, #tpu.memory_space<vmem>>, %arg5: memref<8x128xf32, #tpu.memory_space<vmem>>, %arg6: memref<8x128xf32, #tpu.memory_space<vmem>>, %arg7: memref<1x24x128xf32, #tpu.memory_space<vmem>>) attributes {dimension_semantics = [#tpu.dimension_semantics<parallel>, #tpu.dimension_semantics<parallel>], iteration_bounds = array<i64: 1, 2>, scalar_prefetch = 0 : i64, scratch_operands = 0 : i64, tpu.core_type = #tpu.core_type<tc>, window_params = [{transform_indices = @transform_0, window_bounds = array<i64: 1, 32, 128>}, {pipeline_mode = #tpu.pipeline_mode<synchronous>, transform_indices = @transform_1, window_bounds = array<i64: 24, 32>}, {pipeline_mode = #tpu.pipeline_mode<synchronous>, transform_indices = @transform_2, window_bounds = array<i64: 24, 1>}, {transform_indices = @transform_3, window_bounds = array<i64: 8, 128>}, {transform_indices = @transform_4, window_bounds = array<i64: 8, 128>}, {transform_indices = @transform_5, window_bounds = array<i64: 1, 24, 128>}]} {
    %c0 = arith.constant 0 : index
    %c0_0 = arith.constant 0 : index
    %0 = vector.load %arg3[%c0, %c0_0] : memref<24x32xbf16, #tpu.memory_space<vmem>>, vector<24x32xbf16>
    %c0_1 = arith.constant 0 : index
    %c0_2 = arith.constant 0 : index
    %c0_3 = arith.constant 0 : index
    %1 = vector.load %arg2[%c0_1, %c0_2, %c0_3] : memref<1x32x128xbf16, #tpu.memory_space<vmem>>, vector<1x32x128xbf16>
    %2 = vector.shape_cast %1 : vector<1x32x128xbf16> to vector<32x128xbf16>
    %cst = arith.constant dense<0.000000e+00> : vector<24x128xf32>
    %3 = tpu.matmul %0, %2, %cst {dimension_numbers = #tpu.dot_dimension_numbers<[1], [0], [0], [1], [0, 0, 1, 1], [], []>} : vector<24x32xbf16>, vector<32x128xbf16>, vector<24x128xf32> -> vector<24x128xf32>
    %c0_4 = arith.constant 0 : index
    %c0_5 = arith.constant 0 : index
    %4 = vector.load %arg4[%c0_4, %c0_5] : memref<24x1xf32, #tpu.memory_space<vmem>>, vector<24x1xf32>
    %5 = vector.broadcast %4 : vector<24x1xf32> to vector<24x128xf32>
    %6 = arith.addf %3, %5 : vector<24x128xf32>
    %c0_6 = arith.constant 0 : index
    %c0_7 = arith.constant 0 : index
    %7 = vector.load %arg6[%c0_6, %c0_7] : memref<8x128xf32, #tpu.memory_space<vmem>>, vector<8x128xf32>
    %c0_8 = arith.constant 0 : index
    %c0_9 = arith.constant 0 : index
    %8 = vector.load %arg5[%c0_8, %c0_9] : memref<8x128xf32, #tpu.memory_space<vmem>>, vector<8x128xf32>
    %9 = vector.extract_strided_slice %6 {offsets = [0, 0], sizes = [8, 128], strides = [1, 1]} : vector<24x128xf32> to vector<8x128xf32>
    %10 = arith.mulf %9, %7 : vector<8x128xf32>
    %11 = arith.addf %8, %10 : vector<8x128xf32>
    %c0_10 = arith.constant 0 : index
    %c0_11 = arith.constant 0 : index
    %c0_12 = arith.constant 0 : index
    %12 = vector.load %arg7[%c0_10, %c0_11, %c0_12] : memref<1x24x128xf32, #tpu.memory_space<vmem>>, vector<1x8x128xf32>
    %13 = vector.shape_cast %12 : vector<1x8x128xf32> to vector<8x128xf32>
    %14 = vector.shape_cast %11 : vector<8x128xf32> to vector<1x8x128xf32>
    tpu.vector_store %arg7[%c0_10, %c0_11, %c0_12], %14 {strides = array<i32>} : memref<1x24x128xf32, #tpu.memory_space<vmem>>, vector<1x8x128xf32>,
    %15 = vector.extract_strided_slice %6 {offsets = [8, 0], sizes = [8, 128], strides = [1, 1]} : vector<24x128xf32> to vector<8x128xf32>
    %16 = math.exp %15 : vector<8x128xf32>
    %17 = arith.mulf %7, %16 : vector<8x128xf32>
    %c0_13 = arith.constant 0 : index
    %c8 = arith.constant 8 : index
    %c0_14 = arith.constant 0 : index
    %18 = vector.load %arg7[%c0_13, %c8, %c0_14] : memref<1x24x128xf32, #tpu.memory_space<vmem>>, vector<1x8x128xf32>
    %19 = vector.shape_cast %18 : vector<1x8x128xf32> to vector<8x128xf32>
    %20 = vector.shape_cast %17 : vector<8x128xf32> to vector<1x8x128xf32>
    tpu.vector_store %arg7[%c0_13, %c8, %c0_14], %20 {strides = array<i32>} : memref<1x24x128xf32, #tpu.memory_space<vmem>>, vector<1x8x128xf32>,
    %21 = vector.extract_strided_slice %6 {offsets = [16, 0], sizes = [8, 128], strides = [1, 1]} : vector<24x128xf32> to vector<8x128xf32>
    %22 = arith.negf %21 : vector<8x128xf32>
    %23 = math.exp %22 : vector<8x128xf32>
    %cst_15 = arith.constant 1.000000e+00 : f32
    %24 = vector.broadcast %cst_15 : f32 to vector<8x128xf32>
    %25 = arith.addf %24, %23 : vector<8x128xf32>
    %26 = arith.divf %24, %25 : vector<8x128xf32>
    %c0_16 = arith.constant 0 : index
    %c16 = arith.constant 16 : index
    %c0_17 = arith.constant 0 : index
    %27 = vector.load %arg7[%c0_16, %c16, %c0_17] : memref<1x24x128xf32, #tpu.memory_space<vmem>>, vector<1x8x128xf32>
    %28 = vector.shape_cast %27 : vector<1x8x128xf32> to vector<8x128xf32>
    %29 = vector.shape_cast %26 : vector<8x128xf32> to vector<1x8x128xf32>
    tpu.vector_store %arg7[%c0_16, %c16, %c0_17], %29 {strides = array<i32>} : memref<1x24x128xf32, #tpu.memory_space<vmem>>, vector<1x8x128xf32>,
    return
  }
  func.func @transform_0(%arg0: i32, %arg1: i32) -> (i32, i32, i32) {
    %c0_i32 = arith.constant 0 : i32
    %c0_i32_0 = arith.constant 0 : i32
    return %arg1, %c0_i32, %arg0 : i32, i32, i32
  }
  func.func @transform_1(%arg0: i32, %arg1: i32) -> (i32, i32) {
    %c0_i32 = arith.constant 0 : i32
    %c0_i32_0 = arith.constant 0 : i32
    %c0_i32_1 = arith.constant 0 : i32
    return %c0_i32, %c0_i32_0 : i32, i32
  }
  func.func @transform_2(%arg0: i32, %arg1: i32) -> (i32, i32) {
    %c0_i32 = arith.constant 0 : i32
    %c0_i32_0 = arith.constant 0 : i32
    %c0_i32_1 = arith.constant 0 : i32
    return %c0_i32, %c0_i32_0 : i32, i32
  }
  func.func @transform_3(%arg0: i32, %arg1: i32) -> (i32, i32) {
    %c0_i32 = arith.constant 0 : i32
    %c0_i32_0 = arith.constant 0 : i32
    return %c0_i32, %arg0 : i32, i32
  }
  func.func @transform_4(%arg0: i32, %arg1: i32) -> (i32, i32) {
    %c0_i32 = arith.constant 0 : i32
    %c0_i32_0 = arith.constant 0 : i32
    return %c0_i32, %arg0 : i32, i32
  }
  func.func @transform_5(%arg0: i32, %arg1: i32) -> (i32, i32, i32) {
    %c0_i32 = arith.constant 0 : i32
    %c0_i32_0 = arith.constant 0 : i32
    return %arg1, %c0_i32, %arg0 : i32, i32, i32
  }
}

</mosaic_0001>

<llo_original>
// kernel: tpu_custom_call.1
$region0: #{tpu_custom_call.1}
  #allocation0 [shape = 'u32[]', space=smem, size = 0x4, offset = 0x4, fixed_abs, tag = 'smem constant byte address 0x4 - core index']
  #allocation1 [shape = 'u32[144,128]{1,0:T(1,128)}', space=vmem, size = 0x12000, scoped, tag = 'internal scratch']
  %s0 = inlined_call_operand.hbm [shape: bf16[2,32,128], index: 0, kind: input, shape index: {}]
  %s1 = inlined_call_operand.vmem [shape: bf16[24,32], index: 1, kind: input, shape index: {}]
  %s2 = inlined_call_operand.vmem [shape: f32[24,1], index: 2, kind: input, shape index: {}]
  %s3 = inlined_call_operand.vmem [shape: f32[8,128], index: 3, kind: input, shape index: {}]
  %s4 = inlined_call_operand.vmem [shape: f32[8,128], index: 4, kind: input, shape index: {}]
  %s5 = inlined_call_operand.hbm [shape: f32[2,24,128], index: 5, kind: output, shape index: {}]
  %s6 = sld [smem:[#allocation0]]
  $region57: #{tpu_custom_call.1} parent=0
    _
  %s8 = ssub.s32 1, %s6
  %s9 = scalar_select 0, %s8, %s6
  $region1: #{tpu_custom_call.1} parent=0
    #allocation2 [shape = 'u8[16384]{0}', space=vmem, size = 0x4000, scoped, tag = 'input window, operand 0']
    #allocation3 [shape = 's32[2]{0}', space=sflag, size = 0x8, scoped, tag = 'scoped memory for tpu_custom_call.1']
    #allocation4 [shape = 's32[2]{0}', space=sflag, size = 0x8, scoped, tag = 'scoped memory for tpu_custom_call.1']
    #allocation5 [shape = 'u8[24576]{0}', space=vmem, size = 0x6000, scoped, tag = 'output window, operand 0']
    %10 = vsyncpa [#allocation3], 0
    %s11 = scalar_lea.sflag [#allocation3], 1
    %12 = vsyncpa %s11, 0
    %13 = vsyncpa [#allocation4], 0
    %s14 = scalar_lea.sflag [#allocation4], 1
    %15 = vsyncpa %s14, 0
    loop: start=0, step=1, limit=4
    $region2: #{tpu_custom_call.1} parent=1 // loop_pre_header
      _
    $region3: #{tpu_custom_call.1} parent=1 // loop_header
      %s17 = sphi 0, %s21
      %p18 = scmp.ge.s32.totalorder %s17, 4
      %s24 = sphi 0, %s36
      %s25 = sphi 0, %s32
      %s26 = sphi 0, %s24
      %s27 = sphi 0, %s25
      %s28 = sphi 0, %s26
      %s29 = sphi 0, %s27
      %s41 = sphi 0, %s43
      %s44 = sphi 0, %s41
      %s45 = sphi 0, %s44
      %s61 = sphi 0, %s45
      %s65 = sphi 0, %s65
      %s67 = sphi 0, %s65
      %s68 = sphi 0, %s67
      %s82 = sphi 0, %s68
      %s86 = sphi 0, %s86
      %s88 = sphi 0, %s86
      %s89 = sphi 0, %s88
      %s103 = sphi 0, %s89
      %s109 = sphi 0, %s111
      %s112 = sphi 0, %s109
      %s113 = sphi 0, %s112
      %s129 = sphi 0, %s113
      %s135 = sphi 0, %s137
      %s138 = sphi 0, %s135
      %s139 = sphi 0, %s138
      %s155 = sphi 0, %s139
      %s163 = sphi 0, %s165
      %s166 = sphi 0, %s163
      %s167 = sphi 0, %s166
      %s183 = sphi 0, %s167
    $region4: #{tpu_custom_call.1} parent=1 // loop_header_branch
      %20 = sbr.rel (%p18) target = $region8
    $region5: #{tpu_custom_call.1} parent=1 // loop_body
      %s22 = ssub.s32 %s17, 1
      %s23 = ssub.s32 %s17, 2
      %s30 = sadd.s32 1, %s25
      %p31 = scmp.ge.s32.totalorder %s30, 2
      %s32 = scalar_select %p31, 0, %s30
      %s33 = sadd.s32 1, %s24
      %s34 = scalar_select %p31, %s33, %s24
      %p35 = scmp.ge.s32.totalorder %s34, 1
      %s36 = scalar_select %p35, 0, %s34
      %s37 = ssub.s32 %s25, %s32
      %s38 = ssub.s32 %s24, %s36
      %s39 = sor.u32 %s37, %s38
      %p40 = scmp.eq.s32.totalorder %s39, 0
      %s42 = sadd.s32 %s41, 1
      %s43 = scalar_select %p40, %s41, %s42
      %p46 = pneg %p40
      %p47 = scmp.eq.s32.totalorder %s17, 1
      %p48 = por %p46, %p47
      %p49 = scmp.ne.s32.totalorder %s41, %s44
      %p50 = scmp.eq.s32.totalorder %s17, 0
      %p51 = por %p49, %p50
      %p52 = scmp.ne.s32.totalorder %s41, %s44
      %p53 = scmp.eq.s32.totalorder %s22, 1
      %p54 = por %p52, %p53
      %p55 = scmp.ne.s32.totalorder %s44, %s45
      %p56 = scmp.eq.s32.totalorder %s22, 0
      %p57 = por %p55, %p56
      %p58 = scmp.ne.s32.totalorder %s44, %s45
      %p59 = scmp.eq.s32.totalorder %s23, 1
      %p60 = por %p58, %p59
      %p62 = scmp.ne.s32.totalorder %s45, %s61
      %p63 = scmp.eq.s32.totalorder %s23, 0
      %p64 = por %p62, %p63
      %s66 = sadd.s32 %s65, 1
      %p69 = scmp.eq.s32.totalorder %s17, 1
      %p70 = scmp.ne.s32.totalorder %s65, %s67
      %p71 = scmp.eq.s32.totalorder %s17, 0
      %p72 = por %p70, %p71
      %p73 = scmp.ne.s32.totalorder %s65, %s67
      %p74 = scmp.eq.s32.totalorder %s22, 1
      %p75 = por %p73, %p74
      %p76 = scmp.ne.s32.totalorder %s67, %s68
      %p77 = scmp.eq.s32.totalorder %s22, 0
      %p78 = por %p76, %p77
      %p79 = scmp.ne.s32.totalorder %s67, %s68
      %p80 = scmp.eq.s32.totalorder %s23, 1
      %p81 = por %p79, %p80
      %p83 = scmp.ne.s32.totalorder %s68, %s82
      %p84 = scmp.eq.s32.totalorder %s23, 0
      %p85 = por %p83, %p84
      %s87 = sadd.s32 %s86, 1
      %p90 = scmp.eq.s32.totalorder %s17, 1
      %p91 = scmp.ne.s32.totalorder %s86, %s88
      %p92 = scmp.eq.s32.totalorder %s17, 0
      %p93 = por %p91, %p92
      %p94 = scmp.ne.s32.totalorder %s86, %s88
      %p95 = scmp.eq.s32.totalorder %s22, 1
      %p96 = por %p94, %p95
      %p97 = scmp.ne.s32.totalorder %s88, %s89
      %p98 = scmp.eq.s32.totalorder %s22, 0
      %p99 = por %p97, %p98
      %p100 = scmp.ne.s32.totalorder %s88, %s89
      %p101 = scmp.eq.s32.totalorder %s23, 1
      %p102 = por %p100, %p101
      %p104 = scmp.ne.s32.totalorder %s89, %s103
      %p105 = scmp.eq.s32.totalorder %s23, 0
      %p106 = por %p104, %p105
      %s107 = ssub.s32 %s24, %s36
      %p108 = scmp.eq.s32.totalorder %s107, 0
      %s110 = sadd.s32 %s109, 1
      %s111 = scalar_select %p108, %s109, %s110
      %p114 = pneg %p108
      %p115 = scmp.eq.s32.totalorder %s17, 1
      %p116 = por %p114, %p115
      %p117 = scmp.ne.s32.totalorder %s109, %s112
      %p118 = scmp.eq.s32.totalorder %s17, 0
      %p119 = por %p117, %p118
      %p120 = scmp.ne.s32.totalorder %s109, %s112
      %p121 = scmp.eq.s32.totalorder %s22, 1
      %p122 = por %p120, %p121
      %p123 = scmp.ne.s32.totalorder %s112, %s113
      %p124 = scmp.eq.s32.totalorder %s22, 0
      %p125 = por %p123, %p124
      %p126 = scmp.ne.s32.totalorder %s112, %s113
      %p127 = scmp.eq.s32.totalorder %s23, 1
      %p128 = por %p126, %p127
      %p130 = scmp.ne.s32.totalorder %s113, %s129
      %p131 = scmp.eq.s32.totalorder %s23, 0
      %p132 = por %p130, %p131
      %s133 = ssub.s32 %s24, %s36
      %p134 = scmp.eq.s32.totalorder %s133, 0
      %s136 = sadd.s32 %s135, 1
      %s137 = scalar_select %p134, %s135, %s136
      %p140 = pneg %p134
      %p141 = scmp.eq.s32.totalorder %s17, 1
      %p142 = por %p140, %p141
      %p143 = scmp.ne.s32.totalorder %s135, %s138
      %p144 = scmp.eq.s32.totalorder %s17, 0
      %p145 = por %p143, %p144
      %p146 = scmp.ne.s32.totalorder %s135, %s138
      %p147 = scmp.eq.s32.totalorder %s22, 1
      %p148 = por %p146, %p147
      %p149 = scmp.ne.s32.totalorder %s138, %s139
      %p150 = scmp.eq.s32.totalorder %s22, 0
      %p151 = por %p149, %p150
      %p152 = scmp.ne.s32.totalorder %s138, %s139
      %p153 = scmp.eq.s32.totalorder %s23, 1
      %p154 = por %p152, %p153
      %p156 = scmp.ne.s32.totalorder %s139, %s155
      %p157 = scmp.eq.s32.totalorder %s23, 0
      %p158 = por %p156, %p157
      %s159 = ssub.s32 %s25, %s32
      %s160 = ssub.s32 %s24, %s36
      %s161 = sor.u32 %s159, %s160
      %p162 = scmp.eq.s32.totalorder %s161, 0
      %s164 = sadd.s32 %s163, 1
      %s165 = scalar_select %p162, %s163, %s164
      %p168 = pneg %p162
      %p169 = scmp.eq.s32.totalorder %s17, 1
      %p170 = por %p168, %p169
      %p171 = scmp.ne.s32.totalorder %s163, %s166
      %p172 = scmp.eq.s32.totalorder %s17, 0
      %p173 = por %p171, %p172
      %p174 = scmp.ne.s32.totalorder %s163, %s166
      %p175 = scmp.eq.s32.totalorder %s22, 1
      %p176 = por %p174, %p175
      %p177 = scmp.ne.s32.totalorder %s166, %s167
      %p178 = scmp.eq.s32.totalorder %s22, 0
      %p179 = por %p177, %p178
      %p180 = scmp.ne.s32.totalorder %s166, %s167
      %p181 = scmp.eq.s32.totalorder %s23, 1
      %p182 = por %p180, %p181
      %p184 = scmp.ne.s32.totalorder %s167, %s183
      %p185 = scmp.eq.s32.totalorder %s23, 0
      %p186 = por %p184, %p185
      %p187 = scmp.le.s32.totalorder 1, %s17
      %p188 = scmp.lt.s32.totalorder %s17, 3
      %p189 = pnand %p187, %p188
      %p190 = pneg %p189
      // Predicated region
      $region9: #{tpu_custom_call.1} parent=5 // pred_check
        _
      $region10: #{tpu_custom_call.1} parent=5 // pred_check_branch
        %192 = sbr.rel (%p189) target = $region12
      $region11: #{tpu_custom_call.1} parent=5 // pred_region
        %s193 = ssub.s32 %s17, 1
        // Predicated region
        $region13: #{tpu_custom_call.1} parent=11 // pred_check
          %p194 = pneg %p78
        $region14: #{tpu_custom_call.1} parent=11 // pred_check_branch
          %196 = sbr.rel (%p194) target = $region16
        $region15: #{tpu_custom_call.1} parent=11 // pred_region
          _
        $region16: #{tpu_custom_call.1} parent=11 // pred_fallthru
          _
        // Predicated region
        $region17: #{tpu_custom_call.1} parent=11 // pred_check
          %p197 = pneg %p99
        $region18: #{tpu_custom_call.1} parent=11 // pred_check_branch
          %199 = sbr.rel (%p197) target = $region20
        $region19: #{tpu_custom_call.1} parent=11 // pred_region
          _
        $region20: #{tpu_custom_call.1} parent=11 // pred_fallthru
          _
        // Predicated region
        $region21: #{tpu_custom_call.1} parent=11 // pred_check
          %p200 = pneg %p125
        $region22: #{tpu_custom_call.1} parent=11 // pred_check_branch
          %202 = sbr.rel (%p200) target = $region24
        $region23: #{tpu_custom_call.1} parent=11 // pred_region
          %p203 = scmp.lt.s32.totalorder %s26, 0
          %s204 = scalar_select %p203, %s26, 0
          %s205 = smul.addr %s204, 8
          %s206 = scalar_lea.vmem %s3, %s205
        $region24: #{tpu_custom_call.1} parent=11 // pred_fallthru
          _
        // Predicated region
        $region25: #{tpu_custom_call.1} parent=11 // pred_check
          %p207 = pneg %p151
        $region26: #{tpu_custom_call.1} parent=11 // pred_check_branch
          %209 = sbr.rel (%p207) target = $region28
        $region27: #{tpu_custom_call.1} parent=11 // pred_region
          %p210 = scmp.lt.s32.totalorder %s26, 0
          %s211 = scalar_select %p210, %s26, 0
          %s212 = smul.addr %s211, 8
          %s213 = scalar_lea.vmem %s4, %s212
        $region28: #{tpu_custom_call.1} parent=11 // pred_fallthru
          _
      $region12: #{tpu_custom_call.1} parent=5 // pred_fallthru
        _
      %p214 = scmp.lt.s32.totalorder %s17, 2
      // Predicated region
      $region29: #{tpu_custom_call.1} parent=5 // pred_check
        %p215 = pneg %p214
      $region30: #{tpu_custom_call.1} parent=5 // pred_check_branch
        %217 = sbr.rel (%p215) target = $region32
      $region31: #{tpu_custom_call.1} parent=5 // pred_region
        // Predicated region
        $region33: #{tpu_custom_call.1} parent=31 // pred_check
          %p218 = pneg %p51
        $region34: #{tpu_custom_call.1} parent=31 // pred_check_branch
          %220 = sbr.rel (%p218) target = $region36
        $region35: #{tpu_custom_call.1} parent=31 // pred_region
          %s221 = sand.u32 %s41, 1
          %s222 = scalar_lea.sflag [#allocation3], %s221
          %s223 = sand.u32 %s41, 1
          %s224 = smul.addr %s223, 16
          %s225 = scalar_lea.vmem [#allocation2], %s224
          %s227 = ssub.s32 256, 256
          %228 = vsyncadd %s222, %s227
          %s229 = smul.addr %s25, 4
          %s230 = sadd.s32 %s24, %s229
          %s231 = smul.addr %s230, 64
          %s232 = scalar_lea.hbm %s0, %s231
          %s233 = sshll.u32 %s225, 4
          %s234 = int_to_ptr.vmem [resolvable:$true] %s233
          %239 = dma.hbm_to_vmem [thread:$0]  %s232, 256, %s234, %s222, 64, 64, 4
        $region36: #{tpu_custom_call.1} parent=31 // pred_fallthru
          _
      $region32: #{tpu_custom_call.1} parent=5 // pred_fallthru
        _
      %p240 = scmp.le.s32.totalorder 1, %s17
      %p241 = scmp.lt.s32.totalorder %s17, 3
      %p242 = pnand %p240, %p241
      %p243 = pneg %p242
      // Predicated region
      $region37: #{tpu_custom_call.1} parent=5 // pred_check
        _
      $region38: #{tpu_custom_call.1} parent=5 // pred_check_branch
        %245 = sbr.rel (%p242) target = $region40
      $region39: #{tpu_custom_call.1} parent=5 // pred_region
        %s246 = ssub.s32 %s17, 1
        %s247 = sand.u32 %s44, 1
        %s248 = scalar_lea.sflag [#allocation3], %s247
        %s249 = sand.u32 %s44, 1
        %s250 = smul.addr %s249, 16
        %s251 = scalar_lea.vmem [#allocation2], %s250
        // Predicated region
        $region41: #{tpu_custom_call.1} parent=39 // pred_check
          %p252 = pneg %p57
        $region42: #{tpu_custom_call.1} parent=39 // pred_check_branch
          %254 = sbr.rel (%p252) target = $region44
        $region43: #{tpu_custom_call.1} parent=39 // pred_region
          %255 = dma.done %s248, 256
        $region44: #{tpu_custom_call.1} parent=39 // pred_fallthru
          _
        %s256 = sand.u32 %s44, 1
        %s257 = scalar_lea.sflag [#allocation3], %s256
        %s258 = sand.u32 %s44, 1
        %s259 = smul.addr %s258, 16
        %s260 = scalar_lea.vmem [#allocation2], %s259
        %p261 = pneg %p57
        %p262 = pneg %p54
        %p263 = pneg %p78
        %p264 = pneg %p75
        %p265 = pneg %p99
        %p266 = pneg %p96
        %p267 = scmp.lt.s32.totalorder %s26, 0
        %s268 = scalar_select %p267, %s26, 0
        %s269 = smul.addr %s268, 8
        %s270 = scalar_lea.vmem %s3, %s269
        %p271 = pneg %p125
        %p272 = pneg %p122
        %p273 = scmp.lt.s32.totalorder %s26, 0
        %s274 = scalar_select %p273, %s26, 0
        %s275 = smul.addr %s274, 8
        %s276 = scalar_lea.vmem %s4, %s275
        %p277 = pneg %p151
        %p278 = pneg %p148
        %p279 = pneg %p179
        %p280 = pneg %p176
        %s281 = sand.u32 %s166, 1
        %s282 = scalar_lea.sflag [#allocation4], %s281
        %s283 = sand.u32 %s166, 1
        %s284 = smul.addr %s283, 24
        %s285 = scalar_lea.vmem [#allocation5], %s284
        %p286 = scmp.lt.s32.totalorder %s26, 0
        %s287 = scalar_select %p286, %s26, 0
        %s288 = smul.addr %s287, 8
        %s289 = scalar_lea.vmem %s3, %s288
        %p290 = scmp.lt.s32.totalorder %s26, 0
        %s291 = scalar_select %p290, %s26, 0
        %s292 = smul.addr %s291, 8
        %s293 = scalar_lea.vmem %s4, %s292
        %v295 = vld [vmem:[%s1] sm:$0xf]
        %v296 = vld [vmem:[%s1 + $0x4] sm:$0xf]
        %v297 = vld [vmem:[%s1 + $0x8] sm:$0xf]
        %v298 = vld [vmem:[%s251] sm:$0xf]
        %v299 = vld [vmem:[%s251 + $0x4] sm:$0xf]
        %v300 = vld [vmem:[%s251 + $0x8] sm:$0xf]
        %v301 = vld [vmem:[%s251 + $0xc] sm:$0xf]
        %v302 = vld [vmem:[%s2] sm:$0xff]
        %v303 = vld [vmem:[%s2 + $0x8] sm:$0xff]
        %v304 = vld [vmem:[%s2 + $0x10] sm:$0xff]
        %306 = vset.pattern.permute.xlu0 0
        %307 = vperm.xlu0 %306, %v302
        %v308 = vpop.permute.xlu0 %307
        %311 = vset.pattern.permute.xlu0 0
        %312 = vperm.xlu0 %311, %v303
        %v313 = vpop.permute.xlu0 %312
        %316 = vset.pattern.permute.xlu0 0
        %317 = vperm.xlu0 %316, %v304
        %v318 = vpop.permute.xlu0 %317
        %v323 = vunpack.c.l.b16 %v295
        %v324 = vunpack.c.l.b16 %v296
        %v325 = vunpack.c.l.b16 %v297
        %v326 = vpack.c.b16 %v324, %v323
        %v327 = vpack.c.b16 %v325, %v325
        %v332 = vunpack.c.l.b16 %v298
        %v333 = vunpack.c.l.b16 %v299
        %v334 = vunpack.c.l.b16 %v300
        %v335 = vunpack.c.l.b16 %v301
        %v336 = vpack.c.b16 %v333, %v332
        %v337 = vpack.c.b16 %v335, %v334
        %vm340 = vcmask 261120
        %v342 = vsel %vm340, %v326, 0
        %v345 = vsel %vm340, %v327, 0
        %347 = vmatprep.subr.bf16.mxu0 0
        %348 = vmatpush1.bf16.msra.mxu0 %v336
        %349 = vmatprep.subr.bf16.mxu0 0
        %350 = vmatpush1.bf16.msra.mxu0 %v337
        %351 = vmatprep.subr.bf16.mxu0 0
        %352 = vmatpush1.bf16.msra.mxu0 0
        %353 = vmatprep.subr.bf16.mxu0 0
        %354 = vmatpush1.bf16.msra.mxu0 0
        %355 = vmatprep.subr.bf16.mxu0 0
        %356 = vmatpush1.bf16.msra.mxu0 0
        %357 = vmatprep.subr.bf16.mxu0 0
        %358 = vmatpush1.bf16.msra.mxu0 0
        %359 = vmatprep.subr.bf16.mxu0 0
        %360 = vmatpush1.bf16.msra.mxu0 0
        %361 = vmatprep.subr.bf16.mxu0 0
        %362 = vmatpush1.bf16.msra.mxu0 0
        %363 = vmatprep.subr.bf16.mxu0 0
        %364 = vmatpush1.bf16.msra.mxu0 0
        %365 = vmatprep.subr.bf16.mxu0 0
        %366 = vmatpush1.bf16.msra.mxu0 0
        %367 = vmatprep.subr.bf16.mxu0 0
        %368 = vmatpush1.bf16.msra.mxu0 0
        %369 = vmatprep.subr.bf16.mxu0 0
        %370 = vmatpush1.bf16.msra.mxu0 0
        %371 = vmatprep.subr.bf16.mxu0 0
        %372 = vmatpush1.bf16.msra.mxu0 0
        %373 = vmatprep.subr.bf16.mxu0 0
        %374 = vmatpush1.bf16.msra.mxu0 0
        %375 = vmatprep.subr.bf16.mxu0 0
        %376 = vmatpush1.bf16.msra.mxu0 0
        %377 = vmatprep.subr.bf16.mxu0 0
        %378 = vmatpush1.bf16.msra.mxu0 0
        %379 = vmatprep.mubr.bf16.mxu0 0
        %380 = vmatmul.mubr.bf16.gmra.mrb[0].mxu0 %v342
        %v381 = vpop.f32.mrb[0].mxu0
        %v382 = vadd.f32 %v308, %v381
        %v383 = vpop.f32.mrb[0].mxu0
        %v384 = vpop.f32.mrb[0].mxu0
        %v385 = vadd.f32 %v313, %v384
        %v386 = vpop.f32.mrb[0].mxu0
        %387 = vmatprep.mubr.bf16.mxu0 0
        %388 = vmatmul.mubr.bf16.gmra.mrb[0].mxu0 %v345
        %v389 = vpop.f32.mrb[0].mxu0
        %v390 = vadd.f32 %v318, %v389
        %v391 = vpop.f32.mrb[0].mxu0
        %v392 = vpop.f32.mrb[0].mxu0
        %v393 = vpop.f32.mrb[0].mxu0
        %394 = vdwg.mxu0
        %v395 = vld [vmem:[%s293] sm:$0xff]
        %v396 = vld [vmem:[%s289] sm:$0xff]
        %v397 = vmul.f32 %v382, %v395
        %v398 = vadd.f32 %v396, %v397
        %399 = vst [vmem:[%s285] sm:$0xff] %v398
        %v400 = vmul.f32 %v385, 1.442695
        %v401 = vpow.pop %v400
        %v402 = vmul.f32 %v395, %v401
        %403 = vst [vmem:[%s285 + $0x8] sm:$0xff] %v402
        %v404 = vxor.u32 %v390, 2147483648
        %v405 = vmul.f32 %v404, 1.442695
        %v406 = vpow.pop %v405
        %v407 = vadd.f32 %v406, 1.0
        %v408 = vrcp.pop %v407
        %v409 = vmul.f32 1.0, %v408
        %410 = vst [vmem:[%s285 + $0x10] sm:$0xff] %v409
        %s411 = sand.u32 %s166, 1
        %s412 = scalar_lea.sflag [#allocation4], %s411
        %s413 = sand.u32 %s166, 1
        %s414 = smul.addr %s413, 24
        %s415 = scalar_lea.vmem [#allocation5], %s414
        // Predicated region
        $region45: #{tpu_custom_call.1} parent=39 // pred_check
          %p416 = pneg %p176
        $region46: #{tpu_custom_call.1} parent=39 // pred_check_branch
          %418 = sbr.rel (%p416) target = $region48
        $region47: #{tpu_custom_call.1} parent=39 // pred_region
          %s420 = ssub.s32 384, 384
          %421 = vsyncadd %s412, %s420
          %s422 = smul.addr %s27, 3
          %s423 = sadd.s32 %s26, %s422
          %s424 = smul.addr %s423, 128
          %s425 = scalar_lea.hbm %s5, %s424
          %s426 = sshll.u32 %s415, 4
          %s427 = int_to_ptr.vmem [resolvable:$true] %s426
          %432 = dma.vmem_to_hbm [thread:$0]  %s427, 384, %s425, %s412, 128, 128, 8
        $region48: #{tpu_custom_call.1} parent=39 // pred_fallthru
          _
      $region40: #{tpu_custom_call.1} parent=5 // pred_fallthru
        _
      %p433 = scmp.le.s32.totalorder 2, %s17
      // Predicated region
      $region49: #{tpu_custom_call.1} parent=5 // pred_check
        %p434 = pneg %p433
      $region50: #{tpu_custom_call.1} parent=5 // pred_check_branch
        %436 = sbr.rel (%p434) target = $region52
      $region51: #{tpu_custom_call.1} parent=5 // pred_region
        %s437 = ssub.s32 %s17, 2
        // Predicated region
        $region53: #{tpu_custom_call.1} parent=51 // pred_check
          %p438 = pneg %p182
        $region54: #{tpu_custom_call.1} parent=51 // pred_check_branch
          %440 = sbr.rel (%p438) target = $region56
        $region55: #{tpu_custom_call.1} parent=51 // pred_region
          %s441 = sand.u32 %s167, 1
          %s442 = scalar_lea.sflag [#allocation4], %s441
          %s443 = sand.u32 %s167, 1
          %s444 = smul.addr %s443, 24
          %s445 = scalar_lea.vmem [#allocation5], %s444
          %446 = dma.done %s442, 384
        $region56: #{tpu_custom_call.1} parent=51 // pred_fallthru
          _
      $region52: #{tpu_custom_call.1} parent=5 // pred_fallthru
        _
    $region6: #{tpu_custom_call.1} parent=1 // loop_footer
      %s21 = sadd.s32 1, %s17
    $region7: #{tpu_custom_call.1} parent=1 // loop_footer_branch
      %16 = sbr.rel target = $region3
    $region8: #{tpu_custom_call.1} parent=1 // loop_exit
      _
    %447 = vsyncpa [#allocation3], 1
    %s448 = scalar_lea.sflag [#allocation3], 1
    %449 = vsyncpa %s448, 1
    %450 = vsyncpa [#allocation4], 1
    %s451 = scalar_lea.sflag [#allocation4], 1
    %452 = vsyncpa %s451, 1

</llo_original>
